<compile_context>
chip_gen: v5e
topology: v5e:2x2
jax: 0.10.0
libtpu: 0.0.40
codegen_flags: <defaults>
</compile_context>

<pallas_src>
import jax
import jax.numpy as jnp
from jax.experimental import pallas as pl
from jax.experimental.pallas import tpu as pltpu


_VMEM_TILE_BUDGET = 12 * 1024 * 1024   # working-set target (fits v5e's 16 MiB default scoped VMEM)
_VMEM_LIMIT_BYTES = 32 * 1024 * 1024   # explicit scoped limit (<= v7x's 64 MiB physical VMEM)
_FUSED_GATHER_MAX_NODES = 512          # gate for the one-hot, VMEM-resident gather path


def _round_up(x, m):
    return ((x + m - 1) // m) * m


# -----------------------------------------------------------------------------
# Fused-gather kernel: node table resident in VMEM, row gather as a one-hot
# MXU matmul.  Everything is in the transposed [feature, edge] orientation so
# the (out_feats, tile_e) output block is lane-dense along edges.
# -----------------------------------------------------------------------------
def _fused_edge_kernel(src_ref, dst_ref, embT_ref, w1aT_ref, w1bT_ref,
                       b1_ref, w2T_ref, b2_ref, out_ref):
    # src_ref / dst_ref  : [1, TE]    int32
    # embT_ref           : [h, N]     bf16   (node embeddings, transposed)
    # w1aT_ref / w1bT_ref: [h, h]     bf16   (W1 src/dst halves, transposed)
    # b1_ref             : [h, 1]     f32
    # w2T_ref            : [out, h]   f32
    # b2_ref             : [out, 1]   f32
    # out_ref            : [out, TE]  f32    (lane-dense along edges)
    n_nodes = embT_ref.shape[1]
    tile_e = src_ref.shape[1]
    node_ids = jax.lax.broadcasted_iota(jnp.int32, (n_nodes, tile_e), 0)

    oh_src = jnp.where(node_ids == src_ref[...], 1.0, 0.0).astype(jnp.bfloat16)
    oh_dst = jnp.where(node_ids == dst_ref[...], 1.0, 0.0).astype(jnp.bfloat16)

    # Row gather on the MXU (exact: one-hot selects bf16 rows into f32).
    h_srcT = jnp.dot(embT_ref[...], oh_src, preferred_element_type=jnp.float32)
    h_dstT = jnp.dot(embT_ref[...], oh_dst, preferred_element_type=jnp.float32)

    h1 = (jnp.dot(w1aT_ref[...], h_srcT.astype(jnp.bfloat16),
                  preferred_element_type=jnp.float32)
          + jnp.dot(w1bT_ref[...], h_dstT.astype(jnp.bfloat16),
                    preferred_element_type=jnp.float32)
          + b1_ref[...])
    h1 = jnp.maximum(h1, 0.0)                                   # [h, TE] f32

    s = jnp.dot(w2T_ref[...], h1, preferred_element_type=jnp.float32)  # [out, TE]
    out_ref[...] = (s + b2_ref[...]).astype(out_ref.dtype)


# -----------------------------------------------------------------------------
# Fallback kernel (large node tables): features gathered XLA-side, streamed as
# two bf16 [TE, h] blocks; lane-dense [out, TE] output via dual-contraction.
# -----------------------------------------------------------------------------
def _gathered_edge_kernel(h_src_ref, h_dst_ref, w1a_ref, w1b_ref, b1_ref,
                          w2T_ref, b2_ref, out_ref):
    h1 = (jnp.dot(h_src_ref[...], w1a_ref[...], preferred_element_type=jnp.float32)
          + jnp.dot(h_dst_ref[...], w1b_ref[...], preferred_element_type=jnp.float32)
          + b1_ref[...])
    h1 = jnp.maximum(h1, 0.0)                                   # [TE, h] f32
    s = jax.lax.dot_general(w2T_ref[...], h1,
                            dimension_numbers=(((1,), (1,)), ((), ())),
                            preferred_element_type=jnp.float32)  # [out, TE]
    out_ref[...] = (s + b2_ref[...]).astype(out_ref.dtype)


# -----------------------------------------------------------------------------
# VMEM footprint estimates (lane/sublane padding aware) and tile selection.
# -----------------------------------------------------------------------------
def _fused_tile_bytes(tile_e, n_nodes, h_feats, out_feats):
    b = 2 * 2 * 8 * tile_e * 4                                   # 2 int32 idx streams x dbl-buf (8-sublane pad)
    b += 2 * _round_up(out_feats, 8) * tile_e * 4                # output block x dbl-buf
    b += 2 * _round_up(n_nodes, 16) * tile_e * 2                 # bf16 one-hot temporaries (both sides)
    b += 3 * _round_up(h_feats, 8) * tile_e * 4                  # f32 h_srcT / h_dstT / h1 temporaries
    b += 2 * _round_up(h_feats, 16) * _round_up(n_nodes, 128) * 2  # resident emb^T
    b += 6 * _round_up(h_feats, 8) * _round_up(h_feats, 128) * 4   # weights / biases (generous)
    return b


def _gathered_tile_bytes(tile_e, h_feats, out_feats):
    b = 2 * 2 * tile_e * _round_up(h_feats, 128) * 2             # 2 bf16 streams x dbl-buf (lane-padded)
    b += 2 * _round_up(out_feats, 8) * tile_e * 4                # output block x dbl-buf
    b += tile_e * _round_up(h_feats, 128) * 4                    # f32 h1 temporary
    b += 6 * _round_up(h_feats, 8) * _round_up(h_feats, 128) * 4
    return b


def _pick_tile_e(n_edges, bytes_fn, requested):
    cap = _round_up(max(n_edges, 1), 128)
    if requested is None:
        tile = min(4096, cap)
        if cap >= 256:                                           # >= 2 grid steps (v7x has 2 TCs)
            tile = min(tile, _round_up(-(-n_edges // 2), 128))
    else:
        tile = min(max(128, _round_up(int(requested), 128)), cap)
    while tile > 128 and bytes_fn(tile) > _VMEM_TILE_BUDGET:
        tile = max(128, _round_up(tile // 2, 128))
    return tile


# -----------------------------------------------------------------------------
# Wrapper
# -----------------------------------------------------------------------------
def mlp_predictor_embeddings(emb, src_idx, dst_idx, params, *,
                             tile_e=None, gather_in_kernel=None):
    """Edge scores for MLPPredictorEmbeddings.

    emb:      [N, h_feats]
    src_idx:  [E] int32 source-node index per edge
    dst_idx:  [E] int32 destination-node index per edge
    params:   dict with w1 [2h, h], b1 [h], w2 [h, out], b2 [out]
              (input-major: y = x @ w + b, i.e. torch Linear weights transposed)
    returns:  [E] when out_feats == 1 (mirrors .squeeze(1)), else [E, out].
    """
    n_nodes, h_feats = emb.shape
    out_feats = params["w2"].shape[1]
    n_edges = src_idx.shape[0]

    if gather_in_kernel is None:
        gather_in_kernel = n_nodes <= _FUSED_GATHER_MAX_NODES

    w1, b1, w2, b2 = params["w1"], params["b1"], params["w2"], params["b2"]
    src_idx = src_idx.astype(jnp.int32)
    dst_idx = dst_idx.astype(jnp.int32)

    if gather_in_kernel:
        bytes_fn = lambda t: _fused_tile_bytes(t, n_nodes, h_feats, out_feats)
    else:
        bytes_fn = lambda t: _gathered_tile_bytes(t, h_feats, out_feats)
    tile = _pick_tile_e(n_edges, bytes_fn, tile_e)
    e_pad = _round_up(max(n_edges, 1), tile)
    grid = (e_pad // tile,)

    # Pad the cheap int32 index streams, never the gathered feature streams.
    pad = e_pad - n_edges
    src_p = jnp.pad(src_idx, (0, pad)) if pad else src_idx
    dst_p = jnp.pad(dst_idx, (0, pad)) if pad else dst_idx

    compiler_params = pltpu.CompilerParams(
        dimension_semantics=("parallel",),
        vmem_limit_bytes=_VMEM_LIMIT_BYTES)

    if gather_in_kernel:
        embT = emb.astype(jnp.bfloat16).T                        # [h, N]
        w1aT = w1[:h_feats].T.astype(jnp.bfloat16)               # [h, h]  (src half, transposed)
        w1bT = w1[h_feats:].T.astype(jnp.bfloat16)               # [h, h]  (dst half, transposed)
        b1c = b1.reshape(h_feats, 1).astype(jnp.float32)
        w2T = w2.T.astype(jnp.float32)                           # [out, h]
        b2c = b2.reshape(out_feats, 1).astype(jnp.float32)

        out = pl.pallas_call(
            _fused_edge_kernel,
            out_shape=jax.ShapeDtypeStruct((out_feats, e_pad), jnp.float32),
            grid_spec=pltpu.PrefetchScalarGridSpec(
                num_scalar_prefetch=0,
                grid=grid,
                in_specs=[
                    pl.BlockSpec((1, tile), lambda i: (0, i)),              # src ids
                    pl.BlockSpec((1, tile), lambda i: (0, i)),              # dst ids
                    pl.BlockSpec((h_feats, n_nodes), lambda i: (0, 0)),     # emb^T (VMEM resident)
                    pl.BlockSpec((h_feats, h_feats), lambda i: (0, 0)),     # W1a^T
                    pl.BlockSpec((h_feats, h_feats), lambda i: (0, 0)),     # W1b^T
                    pl.BlockSpec((h_feats, 1), lambda i: (0, 0)),           # b1
                    pl.BlockSpec((out_feats, h_feats), lambda i: (0, 0)),   # W2^T
                    pl.BlockSpec((out_feats, 1), lambda i: (0, 0)),         # b2
                ],
                out_specs=pl.BlockSpec((out_feats, tile), lambda i: (0, i)),
            ),
            compiler_params=compiler_params,
        )(src_p.reshape(1, e_pad), dst_p.reshape(1, e_pad),
          embT, w1aT, w1bT, b1c, w2T, b2c)
    else:
        # TODO(synk): replace this XLA-side gather with scalar-prefetched
        # indices + manual make_async_copy row DMA for very large node tables.
        emb_b = emb.astype(jnp.bfloat16)
        h_src = emb_b[src_p]                                     # [E_pad, h] bf16
        h_dst = emb_b[dst_p]                                     # [E_pad, h] bf16
        w1a = w1[:h_feats].astype(jnp.bfloat16)
        w1b = w1[h_feats:].astype(jnp.bfloat16)
        b1r = b1.reshape(1, h_feats).astype(jnp.float32)
        w2T = w2.T.astype(jnp.float32)
        b2c = b2.reshape(out_feats, 1).astype(jnp.float32)

        out = pl.pallas_call(
            _gathered_edge_kernel,
            out_shape=jax.ShapeDtypeStruct((out_feats, e_pad), jnp.float32),
            grid_spec=pltpu.PrefetchScalarGridSpec(
                num_scalar_prefetch=0,
                grid=grid,
                in_specs=[
                    pl.BlockSpec((tile, h_feats), lambda i: (i, 0)),        # h_src
                    pl.BlockSpec((tile, h_feats), lambda i: (i, 0)),        # h_dst
                    pl.BlockSpec((h_feats, h_feats), lambda i: (0, 0)),     # W1a
                    pl.BlockSpec((h_feats, h_feats), lambda i: (0, 0)),     # W1b
                    pl.BlockSpec((1, h_feats), lambda i: (0, 0)),           # b1
                    pl.BlockSpec((out_feats, h_feats), lambda i: (0, 0)),   # W2^T
                    pl.BlockSpec((out_feats, 1), lambda i: (0, 0)),         # b2
                ],
                out_specs=pl.BlockSpec((out_feats, tile), lambda i: (0, i)),
            ),
            compiler_params=compiler_params,
        )(h_src, h_dst, w1a, w1b, b1r, w2T, b2c)

    out = out[:, :n_edges]                                       # drop edge padding
    if out_feats == 1:
        return out[0]                                            # mirror .squeeze(1)
    return out.T                                                 # [E, out]


def _reference(emb, src_idx, dst_idx, params):
    emb = emb.astype(jnp.float32)
    h = jnp.concatenate([emb[src_idx], emb[dst_idx]], axis=1)
    h = jnp.maximum(h @ params["w1"] + params["b1"], 0.0)
    s = h @ params["w2"] + params["b2"]
    return s[:, 0] if params["w2"].shape[1] == 1 else s


if __name__ == "__main__":
    h_feats = 32
    out_feats = 1
    N = 64            # nodes
    E = 300           # edges (not a multiple of the tile -> exercises padding)

    key = jax.random.PRNGKey(0)
    k_emb, k_w1, k_b1, k_w2, k_b2, k_src, k_dst = jax.random.split(key, 7)

    emb = jax.random.normal(k_emb, (N, h_feats), dtype=jnp.float32)
    src_idx = jax.random.randint(k_src, (E,), 0, N, dtype=jnp.int32)
    dst_idx = jax.random.randint(k_dst, (E,), 0, N, dtype=jnp.int32)

    # parameter init (shapes from nn.Linear(h*2, h), nn.Linear(h, out))
    params = {
        "w1": jax.random.normal(k_w1, (2 * h_feats, h_feats), dtype=jnp.float32) * 0.1,
        "b1": jax.random.normal(k_b1, (h_feats,), dtype=jnp.float32) * 0.1,
        "w2": jax.random.normal(k_w2, (h_feats, out_feats), dtype=jnp.float32) * 0.1,
        "b2": jax.random.normal(k_b2, (out_feats,), dtype=jnp.float32) * 0.1,
    }

    ref = _reference(emb, src_idx, dst_idx, params)

    # 1) default: fused in-kernel gather, auto tile (2 grid steps of 256 edges)
    s1 = jax.block_until_ready(
        mlp_predictor_embeddings(emb, src_idx, dst_idx, params))
    assert s1.shape == ref.shape, (s1.shape, ref.shape)
    assert jnp.allclose(s1, ref, atol=3e-2, rtol=3e-2), "mismatch (fused gather)"

    # 2) fused path, small tile -> 3 grid steps (exercises edge padding)
    s2 = jax.block_until_ready(
        mlp_predictor_embeddings(emb, src_idx, dst_idx, params, tile_e=128))
    assert s2.shape == ref.shape, (s2.shape, ref.shape)
    assert jnp.allclose(s2, ref, atol=3e-2, rtol=3e-2), "mismatch (fused, tile_e=128)"

    # 3) large-node-table fallback (XLA-side gather, streamed bf16 features)
    s3 = jax.block_until_ready(
        mlp_predictor_embeddings(emb, src_idx, dst_idx, params,
                                 gather_in_kernel=False))
    assert s3.shape == ref.shape, (s3.shape, ref.shape)
    assert jnp.allclose(s3, ref, atol=3e-2, rtol=3e-2), "mismatch (XLA-gather fallback)"

    print("KERNEL_OK")
</pallas_src>

<mosaic_0001>
module attributes {stable_mosaic.version = 11 : i64} {
  func.func @_fused_edge_kernel(%arg0: i32, %arg1: memref<1x256xi32, #tpu.memory_space<vmem>>, %arg2: memref<1x256xi32, #tpu.memory_space<vmem>>, %arg3: memref<32x64xbf16, #tpu.memory_space<vmem>>, %arg4: memref<32x32xbf16, #tpu.memory_space<vmem>>, %arg5: memref<32x32xbf16, #tpu.memory_space<vmem>>, %arg6: memref<32x1xf32, #tpu.memory_space<vmem>>, %arg7: memref<1x32xf32, #tpu.memory_space<vmem>>, %arg8: memref<1x1xf32, #tpu.memory_space<vmem>>, %arg9: memref<1x256xf32, #tpu.memory_space<vmem>>) attributes {dimension_semantics = [#tpu.dimension_semantics<parallel>], iteration_bounds = array<i64: 2>, scalar_prefetch = 0 : i64, scratch_operands = 0 : i64, tpu.core_type = #tpu.core_type<tc>, window_params = [{transform_indices = @transform_0, window_bounds = array<i64: 1, 256>}, {transform_indices = @transform_1, window_bounds = array<i64: 1, 256>}, {pipeline_mode = #tpu.pipeline_mode<synchronous>, transform_indices = @transform_2, window_bounds = array<i64: 32, 64>}, {pipeline_mode = #tpu.pipeline_mode<synchronous>, transform_indices = @transform_3, window_bounds = array<i64: 32, 32>}, {pipeline_mode = #tpu.pipeline_mode<synchronous>, transform_indices = @transform_4, window_bounds = array<i64: 32, 32>}, {pipeline_mode = #tpu.pipeline_mode<synchronous>, transform_indices = @transform_5, window_bounds = array<i64: 32, 1>}, {pipeline_mode = #tpu.pipeline_mode<synchronous>, transform_indices = @transform_6, window_bounds = array<i64: 1, 32>}, {pipeline_mode = #tpu.pipeline_mode<synchronous>, transform_indices = @transform_7, window_bounds = array<i64: 1, 1>}, {transform_indices = @transform_8, window_bounds = array<i64: 1, 256>}]} {
    %0 = tpu.iota {dimensions = array<i32: 0>} : vector<64x256xi32>
    %c0 = arith.constant 0 : index
    %c0_0 = arith.constant 0 : index
    %1 = vector.load %arg1[%c0, %c0_0] : memref<1x256xi32, #tpu.memory_space<vmem>>, vector<1x256xi32>
    %2 = vector.broadcast %1 : vector<1x256xi32> to vector<64x256xi32>
    %3 = arith.cmpi eq, %0, %2 : vector<64x256xi32>
    %cst = arith.constant 1.000000e+00 : f32
    %cst_1 = arith.constant 0.000000e+00 : f32
    %4 = vector.broadcast %cst : f32 to vector<64x256xf32>
    %5 = vector.broadcast %cst_1 : f32 to vector<64x256xf32>
    %6 = arith.select %3, %4, %5 : vector<64x256xi1>, vector<64x256xf32>
    %7 = arith.truncf %6 : vector<64x256xf32> to vector<64x256xbf16>
    %c0_2 = arith.constant 0 : index
    %c0_3 = arith.constant 0 : index
    %8 = vector.load %arg2[%c0_2, %c0_3] : memref<1x256xi32, #tpu.memory_space<vmem>>, vector<1x256xi32>
    %9 = vector.broadcast %8 : vector<1x256xi32> to vector<64x256xi32>
    %10 = arith.cmpi eq, %0, %9 : vector<64x256xi32>
    %cst_4 = arith.constant 1.000000e+00 : f32
    %cst_5 = arith.constant 0.000000e+00 : f32
    %11 = vector.broadcast %cst_4 : f32 to vector<64x256xf32>
    %12 = vector.broadcast %cst_5 : f32 to vector<64x256xf32>
    %13 = arith.select %10, %11, %12 : vector<64x256xi1>, vector<64x256xf32>
    %14 = arith.truncf %13 : vector<64x256xf32> to vector<64x256xbf16>
    %c0_6 = arith.constant 0 : index
    %c0_7 = arith.constant 0 : index
    %15 = vector.load %arg3[%c0_6, %c0_7] : memref<32x64xbf16, #tpu.memory_space<vmem>>, vector<32x64xbf16>
    %cst_8 = arith.constant dense<0.000000e+00> : vector<32x256xf32>
    %16 = tpu.matmul %15, %7, %cst_8 {dimension_numbers = #tpu.dot_dimension_numbers<[1], [0], [0], [1], [0, 0, 1, 1], [], []>} : vector<32x64xbf16>, vector<64x256xbf16>, vector<32x256xf32> -> vector<32x256xf32>
    %c0_9 = arith.constant 0 : index
    %c0_10 = arith.constant 0 : index
    %17 = vector.load %arg3[%c0_9, %c0_10] : memref<32x64xbf16, #tpu.memory_space<vmem>>, vector<32x64xbf16>
    %cst_11 = arith.constant dense<0.000000e+00> : vector<32x256xf32>
    %18 = tpu.matmul %17, %14, %cst_11 {dimension_numbers = #tpu.dot_dimension_numbers<[1], [0], [0], [1], [0, 0, 1, 1], [], []>} : vector<32x64xbf16>, vector<64x256xbf16>, vector<32x256xf32> -> vector<32x256xf32>
    %c0_12 = arith.constant 0 : index
    %c0_13 = arith.constant 0 : index
    %19 = vector.load %arg4[%c0_12, %c0_13] : memref<32x32xbf16, #tpu.memory_space<vmem>>, vector<32x32xbf16>
    %20 = arith.truncf %16 : vector<32x256xf32> to vector<32x256xbf16>
    %cst_14 = arith.constant dense<0.000000e+00> : vector<32x256xf32>
    %21 = tpu.matmul %19, %20, %cst_14 {dimension_numbers = #tpu.dot_dimension_numbers<[1], [0], [0], [1], [0, 0, 1, 1], [], []>} : vector<32x32xbf16>, vector<32x256xbf16>, vector<32x256xf32> -> vector<32x256xf32>
    %c0_15 = arith.constant 0 : index
    %c0_16 = arith.constant 0 : index
    %22 = vector.load %arg5[%c0_15, %c0_16] : memref<32x32xbf16, #tpu.memory_space<vmem>>, vector<32x32xbf16>
    %23 = arith.truncf %18 : vector<32x256xf32> to vector<32x256xbf16>
    %cst_17 = arith.constant dense<0.000000e+00> : vector<32x256xf32>
    %24 = tpu.matmul %22, %23, %cst_17 {dimension_numbers = #tpu.dot_dimension_numbers<[1], [0], [0], [1], [0, 0, 1, 1], [], []>} : vector<32x32xbf16>, vector<32x256xbf16>, vector<32x256xf32> -> vector<32x256xf32>
    %25 = arith.addf %21, %24 : vector<32x256xf32>
    %c0_18 = arith.constant 0 : index
    %c0_19 = arith.constant 0 : index
    %26 = vector.load %arg6[%c0_18, %c0_19] : memref<32x1xf32, #tpu.memory_space<vmem>>, vector<32x1xf32>
    %27 = vector.broadcast %26 : vector<32x1xf32> to vector<32x256xf32>
    %28 = arith.addf %25, %27 : vector<32x256xf32>
    %cst_20 = arith.constant 0.000000e+00 : f32
    %29 = vector.broadcast %cst_20 : f32 to vector<32x256xf32>
    %30 = arith.maximumf %28, %29 : vector<32x256xf32>
    %c0_21 = arith.constant 0 : index
    %c0_22 = arith.constant 0 : index
    %31 = vector.load %arg7[%c0_21, %c0_22] : memref<1x32xf32, #tpu.memory_space<vmem>>, vector<1x32xf32>
    %cst_23 = arith.constant dense<0.000000e+00> : vector<1x256xf32>
    %32 = tpu.matmul %31, %30, %cst_23 {dimension_numbers = #tpu.dot_dimension_numbers<[1], [0], [0], [1], [0, 0, 1, 1], [], []>} : vector<1x32xf32>, vector<32x256xf32>, vector<1x256xf32> -> vector<1x256xf32>
    %c0_24 = arith.constant 0 : index
    %c0_25 = arith.constant 0 : index
    %33 = vector.load %arg8[%c0_24, %c0_25] : memref<1x1xf32, #tpu.memory_space<vmem>>, vector<1x1xf32>
    %34 = vector.broadcast %33 : vector<1x1xf32> to vector<1x256xf32>
    %35 = arith.addf %32, %34 : vector<1x256xf32>
    %c0_26 = arith.constant 0 : index
    %c0_27 = arith.constant 0 : index
    %36 = vector.load %arg9[%c0_26, %c0_27] : memref<1x256xf32, #tpu.memory_space<vmem>>, vector<1x256xf32>
    tpu.vector_store %arg9[%c0_26, %c0_27], %35 {strides = array<i32>} : memref<1x256xf32, #tpu.memory_space<vmem>>, vector<1x256xf32>,
    return
  }
  func.func @transform_0(%arg0: i32) -> (i32, i32) {
    %c0_i32 = arith.constant 0 : i32
    %c0_i32_0 = arith.constant 0 : i32
    return %c0_i32, %arg0 : i32, i32
  }
  func.func @transform_1(%arg0: i32) -> (i32, i32) {
    %c0_i32 = arith.constant 0 : i32
    %c0_i32_0 = arith.constant 0 : i32
    return %c0_i32, %arg0 : i32, i32
  }
  func.func @transform_2(%arg0: i32) -> (i32, i32) {
    %c0_i32 = arith.constant 0 : i32
    %c0_i32_0 = arith.constant 0 : i32
    %c0_i32_1 = arith.constant 0 : i32
    return %c0_i32, %c0_i32_0 : i32, i32
  }
  func.func @transform_3(%arg0: i32) -> (i32, i32) {
    %c0_i32 = arith.constant 0 : i32
    %c0_i32_0 = arith.constant 0 : i32
    %c0_i32_1 = arith.constant 0 : i32
    return %c0_i32, %c0_i32_0 : i32, i32
  }
  func.func @transform_4(%arg0: i32) -> (i32, i32) {
    %c0_i32 = arith.constant 0 : i32
    %c0_i32_0 = arith.constant 0 : i32
    %c0_i32_1 = arith.constant 0 : i32
    return %c0_i32, %c0_i32_0 : i32, i32
  }
  func.func @transform_5(%arg0: i32) -> (i32, i32) {
    %c0_i32 = arith.constant 0 : i32
    %c0_i32_0 = arith.constant 0 : i32
    %c0_i32_1 = arith.constant 0 : i32
    return %c0_i32, %c0_i32_0 : i32, i32
  }
  func.func @transform_6(%arg0: i32) -> (i32, i32) {
    %c0_i32 = arith.constant 0 : i32
    %c0_i32_0 = arith.constant 0 : i32
    %c0_i32_1 = arith.constant 0 : i32
    return %c0_i32, %c0_i32_0 : i32, i32
  }
  func.func @transform_7(%arg0: i32) -> (i32, i32) {
    %c0_i32 = arith.constant 0 : i32
    %c0_i32_0 = arith.constant 0 : i32
    %c0_i32_1 = arith.constant 0 : i32
    return %c0_i32, %c0_i32_0 : i32, i32
  }
  func.func @transform_8(%arg0: i32) -> (i32, i32) {
    %c0_i32 = arith.constant 0 : i32
    %c0_i32_0 = arith.constant 0 : i32
    return %c0_i32, %arg0 : i32, i32
  }
}

</mosaic_0001>

<llo_original>
// kernel: tpu_custom_call.1
$region0: #{tpu_custom_call.1}
  #allocation0 [shape = 'u32[]', space=smem, size = 0x4, offset = 0x4, fixed_abs, tag = 'smem constant byte address 0x4 - core index']
  #allocation1 [shape = 'u32[72,128]{1,0:T(1,128)}', space=vmem, size = 0x9000, scoped, tag = 'internal scratch']
  #allocation2 [shape = 'f32[1,1]{1,0:T(1,128)S(1)}', space=vmem, size = 0x200, scoped, tag = 'scoped memory for tpu_custom_call.1']
  %s0 = inlined_call_operand.hbm [shape: s32[1,512], index: 0, kind: input, shape index: {}]
  %s1 = inlined_call_operand.hbm [shape: s32[1,512], index: 1, kind: input, shape index: {}]
  %s2 = inlined_call_operand.vmem [shape: bf16[32,64], index: 2, kind: input, shape index: {}]
  %s3 = inlined_call_operand.vmem [shape: bf16[32,32], index: 3, kind: input, shape index: {}]
  %s4 = inlined_call_operand.hbm [shape: bf16[32,32], index: 4, kind: input, shape index: {}]
  %s5 = inlined_call_operand.vmem [shape: f32[32,1], index: 5, kind: input, shape index: {}]
  %s6 = inlined_call_operand.vmem [shape: f32[1,32], index: 6, kind: input, shape index: {}]
  %s7 = inlined_call_operand.<no memory space> [shape: f32[1,1], index: 7, kind: input, shape index: {}]
  %s8 = inlined_call_operand.hbm [shape: f32[1,512], index: 8, kind: output, shape index: {}]
  %s9 = sld [smem:[#allocation0]]
  $region77: #{tpu_custom_call.1} parent=0
    _
  %s11 = ssub.s32 1, %s9
  %s12 = scalar_select 0, %s11, %s9
  %v13 = vstv %s7
  %14 = vst [vmem:[#allocation2] sm:$0x1] %v13
  $region1: #{tpu_custom_call.1} parent=0
    #allocation3 [shape = 'u8[2048]{0}', space=vmem, size = 0x800, scoped, tag = 'input window, operand 0']
    #allocation4 [shape = 's32[2]{0}', space=sflag, size = 0x8, scoped, tag = 'scoped memory for tpu_custom_call.1']
    #allocation5 [shape = 's32[2]{0}', space=sflag, size = 0x8, scoped, tag = 'scoped memory for tpu_custom_call.1']
    #allocation6 [shape = 'u8[2048]{0}', space=vmem, size = 0x800, scoped, tag = 'input window, operand 1']
    #allocation7 [shape = 's32[2]{0}', space=sflag, size = 0x8, scoped, tag = 'scoped memory for tpu_custom_call.1']
    #allocation8 [shape = 'u8[8192]{0}', space=vmem, size = 0x2000, scoped, tag = 'input window, operand 4, single buffered']
    #allocation9 [shape = 'u8[2048]{0}', space=vmem, size = 0x800, scoped, tag = 'output window, operand 0']
    %15 = vsyncpa [#allocation4], 0
    %s16 = scalar_lea.sflag [#allocation4], 1
    %17 = vsyncpa %s16, 0
    %18 = vsyncpa [#allocation7], 0
    %s19 = scalar_lea.sflag [#allocation7], 1
    %20 = vsyncpa %s19, 0
    %21 = vsyncpa [#allocation5], 0
    %s22 = scalar_lea.sflag [#allocation5], 1
    %23 = vsyncpa %s22, 0
    loop: start=0, step=1, limit=4
    $region2: #{tpu_custom_call.1} parent=1 // loop_pre_header
      _
    $region3: #{tpu_custom_call.1} parent=1 // loop_header
      %s25 = sphi 0, %s29
      %p26 = scmp.ge.s32.totalorder %s25, 4
      %s35 = sphi 0, %s37
      %s38 = sphi 0, %s35
      %s39 = sphi 0, %s38
      %s55 = sphi 0, %s39
      %s61 = sphi 0, %s63
      %s64 = sphi 0, %s61
      %s65 = sphi 0, %s64
      %s81 = sphi 0, %s65
      %s85 = sphi 0, %s85
      %s87 = sphi 0, %s85
      %s88 = sphi 0, %s87
      %s102 = sphi 0, %s88
      %s106 = sphi 0, %s106
      %s108 = sphi 0, %s106
      %s109 = sphi 0, %s108
      %s123 = sphi 0, %s109
      %s127 = sphi 0, %s127
      %s129 = sphi 0, %s127
      %s130 = sphi 0, %s129
      %s144 = sphi 0, %s130
      %s148 = sphi 0, %s148
      %s150 = sphi 0, %s148
      %s151 = sphi 0, %s150
      %s165 = sphi 0, %s151
      %s169 = sphi 0, %s169
      %s171 = sphi 0, %s169
      %s172 = sphi 0, %s171
      %s186 = sphi 0, %s172
      %s190 = sphi 0, %s190
      %s192 = sphi 0, %s190
      %s193 = sphi 0, %s192
      %s207 = sphi 0, %s193
      %s213 = sphi 0, %s215
      %s216 = sphi 0, %s213
      %s217 = sphi 0, %s216
      %s233 = sphi 0, %s217
    $region4: #{tpu_custom_call.1} parent=1 // loop_header_branch
      %28 = sbr.rel (%p26) target = $region8
    $region5: #{tpu_custom_call.1} parent=1 // loop_body
      %s30 = ssub.s32 %s25, 1
      %s31 = ssub.s32 %s25, 2
      %s32 = sadd.s32 %s25, 1
      %s33 = ssub.s32 %s25, %s32
      %p34 = scmp.eq.s32.totalorder %s33, 0
      %s36 = sadd.s32 %s35, 1
      %s37 = scalar_select %p34, %s35, %s36
      %p40 = pneg %p34
      %p41 = scmp.eq.s32.totalorder %s25, 1
      %p42 = por %p40, %p41
      %p43 = scmp.ne.s32.totalorder %s35, %s38
      %p44 = scmp.eq.s32.totalorder %s25, 0
      %p45 = por %p43, %p44
      %p46 = scmp.ne.s32.totalorder %s35, %s38
      %p47 = scmp.eq.s32.totalorder %s30, 1
      %p48 = por %p46, %p47
      %p49 = scmp.ne.s32.totalorder %s38, %s39
      %p50 = scmp.eq.s32.totalorder %s30, 0
      %p51 = por %p49, %p50
      %p52 = scmp.ne.s32.totalorder %s38, %s39
      %p53 = scmp.eq.s32.totalorder %s31, 1
      %p54 = por %p52, %p53
      %p56 = scmp.ne.s32.totalorder %s39, %s55
      %p57 = scmp.eq.s32.totalorder %s31, 0
      %p58 = por %p56, %p57
      %s59 = ssub.s32 %s25, %s32
      %p60 = scmp.eq.s32.totalorder %s59, 0
      %s62 = sadd.s32 %s61, 1
      %s63 = scalar_select %p60, %s61, %s62
      %p66 = pneg %p60
      %p67 = scmp.eq.s32.totalorder %s25, 1
      %p68 = por %p66, %p67
      %p69 = scmp.ne.s32.totalorder %s61, %s64
      %p70 = scmp.eq.s32.totalorder %s25, 0
      %p71 = por %p69, %p70
      %p72 = scmp.ne.s32.totalorder %s61, %s64
      %p73 = scmp.eq.s32.totalorder %s30, 1
      %p74 = por %p72, %p73
      %p75 = scmp.ne.s32.totalorder %s64, %s65
      %p76 = scmp.eq.s32.totalorder %s30, 0
      %p77 = por %p75, %p76
      %p78 = scmp.ne.s32.totalorder %s64, %s65
      %p79 = scmp.eq.s32.totalorder %s31, 1
      %p80 = por %p78, %p79
      %p82 = scmp.ne.s32.totalorder %s65, %s81
      %p83 = scmp.eq.s32.totalorder %s31, 0
      %p84 = por %p82, %p83
      %s86 = sadd.s32 %s85, 1
      %p89 = scmp.eq.s32.totalorder %s25, 1
      %p90 = scmp.ne.s32.totalorder %s85, %s87
      %p91 = scmp.eq.s32.totalorder %s25, 0
      %p92 = por %p90, %p91
      %p93 = scmp.ne.s32.totalorder %s85, %s87
      %p94 = scmp.eq.s32.totalorder %s30, 1
      %p95 = por %p93, %p94
      %p96 = scmp.ne.s32.totalorder %s87, %s88
      %p97 = scmp.eq.s32.totalorder %s30, 0
      %p98 = por %p96, %p97
      %p99 = scmp.ne.s32.totalorder %s87, %s88
      %p100 = scmp.eq.s32.totalorder %s31, 1
      %p101 = por %p99, %p100
      %p103 = scmp.ne.s32.totalorder %s88, %s102
      %p104 = scmp.eq.s32.totalorder %s31, 0
      %p105 = por %p103, %p104
      %s107 = sadd.s32 %s106, 1
      %p110 = scmp.eq.s32.totalorder %s25, 1
      %p111 = scmp.ne.s32.totalorder %s106, %s108
      %p112 = scmp.eq.s32.totalorder %s25, 0
      %p113 = por %p111, %p112
      %p114 = scmp.ne.s32.totalorder %s106, %s108
      %p115 = scmp.eq.s32.totalorder %s30, 1
      %p116 = por %p114, %p115
      %p117 = scmp.ne.s32.totalorder %s108, %s109
      %p118 = scmp.eq.s32.totalorder %s30, 0
      %p119 = por %p117, %p118
      %p120 = scmp.ne.s32.totalorder %s108, %s109
      %p121 = scmp.eq.s32.totalorder %s31, 1
      %p122 = por %p120, %p121
      %p124 = scmp.ne.s32.totalorder %s109, %s123
      %p125 = scmp.eq.s32.totalorder %s31, 0
      %p126 = por %p124, %p125
      %s128 = sadd.s32 %s127, 1
      %p131 = scmp.eq.s32.totalorder %s25, 1
      %p132 = scmp.ne.s32.totalorder %s127, %s129
      %p133 = scmp.eq.s32.totalorder %s25, 0
      %p134 = por %p132, %p133
      %p135 = scmp.ne.s32.totalorder %s127, %s129
      %p136 = scmp.eq.s32.totalorder %s30, 1
      %p137 = por %p135, %p136
      %p138 = scmp.ne.s32.totalorder %s129, %s130
      %p139 = scmp.eq.s32.totalorder %s30, 0
      %p140 = por %p138, %p139
      %p141 = scmp.ne.s32.totalorder %s129, %s130
      %p142 = scmp.eq.s32.totalorder %s31, 1
      %p143 = por %p141, %p142
      %p145 = scmp.ne.s32.totalorder %s130, %s144
      %p146 = scmp.eq.s32.totalorder %s31, 0
      %p147 = por %p145, %p146
      %s149 = sadd.s32 %s148, 1
      %p152 = scmp.eq.s32.totalorder %s25, 1
      %p153 = scmp.ne.s32.totalorder %s148, %s150
      %p154 = scmp.eq.s32.totalorder %s25, 0
      %p155 = por %p153, %p154
      %p156 = scmp.ne.s32.totalorder %s148, %s150
      %p157 = scmp.eq.s32.totalorder %s30, 1
      %p158 = por %p156, %p157
      %p159 = scmp.ne.s32.totalorder %s150, %s151
      %p160 = scmp.eq.s32.totalorder %s30, 0
      %p161 = por %p159, %p160
      %p162 = scmp.ne.s32.totalorder %s150, %s151
      %p163 = scmp.eq.s32.totalorder %s31, 1
      %p164 = por %p162, %p163
      %p166 = scmp.ne.s32.totalorder %s151, %s165
      %p167 = scmp.eq.s32.totalorder %s31, 0
      %p168 = por %p166, %p167
      %s170 = sadd.s32 %s169, 1
      %p173 = scmp.eq.s32.totalorder %s25, 1
      %p174 = scmp.ne.s32.totalorder %s169, %s171
      %p175 = scmp.eq.s32.totalorder %s25, 0
      %p176 = por %p174, %p175
      %p177 = scmp.ne.s32.totalorder %s169, %s171
      %p178 = scmp.eq.s32.totalorder %s30, 1
      %p179 = por %p177, %p178
      %p180 = scmp.ne.s32.totalorder %s171, %s172
      %p181 = scmp.eq.s32.totalorder %s30, 0
      %p182 = por %p180, %p181
      %p183 = scmp.ne.s32.totalorder %s171, %s172
      %p184 = scmp.eq.s32.totalorder %s31, 1
      %p185 = por %p183, %p184
      %p187 = scmp.ne.s32.totalorder %s172, %s186
      %p188 = scmp.eq.s32.totalorder %s31, 0
      %p189 = por %p187, %p188
      %s191 = sadd.s32 %s190, 1
      %p194 = scmp.eq.s32.totalorder %s25, 1
      %p195 = scmp.ne.s32.totalorder %s190, %s192
      %p196 = scmp.eq.s32.totalorder %s25, 0
      %p197 = por %p195, %p196
      %p198 = scmp.ne.s32.totalorder %s190, %s192
      %p199 = scmp.eq.s32.totalorder %s30, 1
      %p200 = por %p198, %p199
      %p201 = scmp.ne.s32.totalorder %s192, %s193
      %p202 = scmp.eq.s32.totalorder %s30, 0
      %p203 = por %p201, %p202
      %p204 = scmp.ne.s32.totalorder %s192, %s193
      %p205 = scmp.eq.s32.totalorder %s31, 1
      %p206 = por %p204, %p205
      %p208 = scmp.ne.s32.totalorder %s193, %s207
      %p209 = scmp.eq.s32.totalorder %s31, 0
      %p210 = por %p208, %p209
      %s211 = ssub.s32 %s25, %s32
      %p212 = scmp.eq.s32.totalorder %s211, 0
      %s214 = sadd.s32 %s213, 1
      %s215 = scalar_select %p212, %s213, %s214
      %p218 = pneg %p212
      %p219 = scmp.eq.s32.totalorder %s25, 1
      %p220 = por %p218, %p219
      %p221 = scmp.ne.s32.totalorder %s213, %s216
      %p222 = scmp.eq.s32.totalorder %s25, 0
      %p223 = por %p221, %p222
      %p224 = scmp.ne.s32.totalorder %s213, %s216
      %p225 = scmp.eq.s32.totalorder %s30, 1
      %p226 = por %p224, %p225
      %p227 = scmp.ne.s32.totalorder %s216, %s217
      %p228 = scmp.eq.s32.totalorder %s30, 0
      %p229 = por %p227, %p228
      %p230 = scmp.ne.s32.totalorder %s216, %s217
      %p231 = scmp.eq.s32.totalorder %s31, 1
      %p232 = por %p230, %p231
      %p234 = scmp.ne.s32.totalorder %s217, %s233
      %p235 = scmp.eq.s32.totalorder %s31, 0
      %p236 = por %p234, %p235
      %p237 = scmp.le.s32.totalorder 1, %s25
      %p238 = scmp.lt.s32.totalorder %s25, 3
      %p239 = pnand %p237, %p238
      %p240 = pneg %p239
      // Predicated region
      $region9: #{tpu_custom_call.1} parent=5 // pred_check
        _
      $region10: #{tpu_custom_call.1} parent=5 // pred_check_branch
        %242 = sbr.rel (%p239) target = $region12
      $region11: #{tpu_custom_call.1} parent=5 // pred_region
        %s243 = ssub.s32 %s25, 1
        // Predicated region
        $region13: #{tpu_custom_call.1} parent=11 // pred_check
          %p244 = pneg %p98
        $region14: #{tpu_custom_call.1} parent=11 // pred_check_branch
          %246 = sbr.rel (%p244) target = $region16
        $region15: #{tpu_custom_call.1} parent=11 // pred_region
          _
        $region16: #{tpu_custom_call.1} parent=11 // pred_fallthru
          _
        // Predicated region
        $region17: #{tpu_custom_call.1} parent=11 // pred_check
          %p247 = pneg %p119
        $region18: #{tpu_custom_call.1} parent=11 // pred_check_branch
          %249 = sbr.rel (%p247) target = $region20
        $region19: #{tpu_custom_call.1} parent=11 // pred_region
          _
        $region20: #{tpu_custom_call.1} parent=11 // pred_fallthru
          _
        // Predicated region
        $region21: #{tpu_custom_call.1} parent=11 // pred_check
          %p250 = pneg %p140
        $region22: #{tpu_custom_call.1} parent=11 // pred_check_branch
          %252 = sbr.rel (%p250) target = $region24
        $region23: #{tpu_custom_call.1} parent=11 // pred_region
          %254 = vsyncadd [#allocation7], 0
          %s255 = sshll.u32 %s4, 4
          %s256 = int_to_ptr.hbm [resolvable:$true] %s255
          %s257 = sshll.u32 [#allocation8], 4
          %s258 = int_to_ptr.vmem [resolvable:$true] %s257
          %263 = dma.hbm_to_vmem [thread:$0]  %s256, 256, %s258, [#allocation7], 64, 64, 4
        $region24: #{tpu_custom_call.1} parent=11 // pred_fallthru
          _
        // Predicated region
        $region25: #{tpu_custom_call.1} parent=11 // pred_check
          %p264 = pneg %p161
        $region26: #{tpu_custom_call.1} parent=11 // pred_check_branch
          %266 = sbr.rel (%p264) target = $region28
        $region27: #{tpu_custom_call.1} parent=11 // pred_region
          _
        $region28: #{tpu_custom_call.1} parent=11 // pred_fallthru
          _
        // Predicated region
        $region29: #{tpu_custom_call.1} parent=11 // pred_check
          %p267 = pneg %p182
        $region30: #{tpu_custom_call.1} parent=11 // pred_check_branch
          %269 = sbr.rel (%p267) target = $region32
        $region31: #{tpu_custom_call.1} parent=11 // pred_region
          _
        $region32: #{tpu_custom_call.1} parent=11 // pred_fallthru
          _
        // Predicated region
        $region33: #{tpu_custom_call.1} parent=11 // pred_check
          %p270 = pneg %p203
        $region34: #{tpu_custom_call.1} parent=11 // pred_check_branch
          %272 = sbr.rel (%p270) target = $region36
        $region35: #{tpu_custom_call.1} parent=11 // pred_region
          _
        $region36: #{tpu_custom_call.1} parent=11 // pred_fallthru
          _
      $region12: #{tpu_custom_call.1} parent=5 // pred_fallthru
        _
      %p273 = scmp.lt.s32.totalorder %s25, 2
      // Predicated region
      $region37: #{tpu_custom_call.1} parent=5 // pred_check
        %p274 = pneg %p273
      $region38: #{tpu_custom_call.1} parent=5 // pred_check_branch
        %276 = sbr.rel (%p274) target = $region40
      $region39: #{tpu_custom_call.1} parent=5 // pred_region
        // Predicated region
        $region41: #{tpu_custom_call.1} parent=39 // pred_check
          %p277 = pneg %p45
        $region42: #{tpu_custom_call.1} parent=39 // pred_check_branch
          %279 = sbr.rel (%p277) target = $region44
        $region43: #{tpu_custom_call.1} parent=39 // pred_region
          %s280 = sand.u32 %s35, 1
          %s281 = scalar_lea.sflag [#allocation4], %s280
          %s282 = sand.u32 %s35, 1
          %s283 = smul.addr %s282, 2
          %s284 = scalar_lea.vmem [#allocation3], %s283
          %s285 = smul.u32 2, %s25
          %287 = vsyncadd %s281, 0
          %s288 = scalar_lea.hbm %s0, %s285
          %s290 = sshll.u32 %s288, 4
          %s291 = int_to_ptr.hbm [resolvable:$true] %s290
          %s292 = sshll.u32 %s284, 4
          %s293 = int_to_ptr.vmem [resolvable:$true] %s292
          %295 = dma.hbm_to_vmem [thread:$0]  %s291, 32, %s293, %s281
        $region44: #{tpu_custom_call.1} parent=39 // pred_fallthru
          _
        // Predicated region
        $region45: #{tpu_custom_call.1} parent=39 // pred_check
          %p296 = pneg %p71
        $region46: #{tpu_custom_call.1} parent=39 // pred_check_branch
          %298 = sbr.rel (%p296) target = $region48
        $region47: #{tpu_custom_call.1} parent=39 // pred_region
          %s299 = sand.u32 %s25, 1
          %s300 = scalar_lea.sflag [#allocation7], %s299
          %s301 = sand.u32 %s61, 1
          %s302 = smul.addr %s301, 2
          %s303 = scalar_lea.vmem [#allocation6], %s302
          %s304 = smul.u32 2, %s25
          %306 = vsyncadd %s300, 0
          %s307 = scalar_lea.hbm %s1, %s304
          %s309 = sshll.u32 %s307, 4
          %s310 = int_to_ptr.hbm [resolvable:$true] %s309
          %s311 = sshll.u32 %s303, 4
          %s312 = int_to_ptr.vmem [resolvable:$true] %s311
          %314 = dma.hbm_to_vmem [thread:$0]  %s310, 32, %s312, %s300
        $region48: #{tpu_custom_call.1} parent=39 // pred_fallthru
          _
      $region40: #{tpu_custom_call.1} parent=5 // pred_fallthru
        _
      %p315 = scmp.le.s32.totalorder 1, %s25
      %p316 = scmp.lt.s32.totalorder %s25, 3
      %p317 = pnand %p315, %p316
      %p318 = pneg %p317
      // Predicated region
      $region49: #{tpu_custom_call.1} parent=5 // pred_check
        _
      $region50: #{tpu_custom_call.1} parent=5 // pred_check_branch
        %320 = sbr.rel (%p317) target = $region52
      $region51: #{tpu_custom_call.1} parent=5 // pred_region
        %s321 = ssub.s32 %s25, 1
        %s322 = sand.u32 %s38, 1
        %s323 = scalar_lea.sflag [#allocation4], %s322
        %s324 = sand.u32 %s38, 1
        %s325 = smul.addr %s324, 2
        %s326 = scalar_lea.vmem [#allocation3], %s325
        // Predicated region
        $region53: #{tpu_custom_call.1} parent=51 // pred_check
          %p327 = pneg %p51
        $region54: #{tpu_custom_call.1} parent=51 // pred_check_branch
          %329 = sbr.rel (%p327) target = $region56
        $region55: #{tpu_custom_call.1} parent=51 // pred_region
          %331 = dma.done %s323, 32
        $region56: #{tpu_custom_call.1} parent=51 // pred_fallthru
          _
        %s332 = sand.u32 %s30, 1
        %s333 = scalar_lea.sflag [#allocation7], %s332
        %s334 = sand.u32 %s64, 1
        %s335 = smul.addr %s334, 2
        %s336 = scalar_lea.vmem [#allocation6], %s335
        // Predicated region
        $region57: #{tpu_custom_call.1} parent=51 // pred_check
          %p337 = pneg %p77
        $region58: #{tpu_custom_call.1} parent=51 // pred_check_branch
          %339 = sbr.rel (%p337) target = $region60
        $region59: #{tpu_custom_call.1} parent=51 // pred_region
          %341 = dma.done %s333, 32
        $region60: #{tpu_custom_call.1} parent=51 // pred_fallthru
          _
        // Predicated region
        $region61: #{tpu_custom_call.1} parent=51 // pred_check
          %p342 = pneg %p140
        $region62: #{tpu_custom_call.1} parent=51 // pred_check_branch
          %344 = sbr.rel (%p342) target = $region64
        $region63: #{tpu_custom_call.1} parent=51 // pred_region
          %346 = dma.done [#allocation7], 256
        $region64: #{tpu_custom_call.1} parent=51 // pred_fallthru
          _
        %s347 = sand.u32 %s38, 1
        %s348 = scalar_lea.sflag [#allocation4], %s347
        %s349 = sand.u32 %s38, 1
        %s350 = smul.addr %s349, 2
        %s351 = scalar_lea.vmem [#allocation3], %s350
        %p352 = pneg %p51
        %p353 = pneg %p48
        %s354 = sand.u32 %s30, 1
        %s355 = scalar_lea.sflag [#allocation7], %s354
        %s356 = sand.u32 %s64, 1
        %s357 = smul.addr %s356, 2
        %s358 = scalar_lea.vmem [#allocation6], %s357
        %p359 = pneg %p77
        %p360 = pneg %p74
        %p361 = pneg %p98
        %p362 = pneg %p95
        %p363 = pneg %p119
        %p364 = pneg %p116
        %p365 = pneg %p140
        %p366 = pneg %p137
        %p367 = pneg %p161
        %p368 = pneg %p158
        %p369 = pneg %p182
        %p370 = pneg %p179
        %p371 = pneg %p203
        %p372 = pneg %p200
        %p373 = pneg %p229
        %p374 = pneg %p226
        %s375 = sand.u32 %s216, 1
        %s376 = scalar_lea.sflag [#allocation5], %s375
        %s377 = sand.u32 %s216, 1
        %s378 = smul.addr %s377, 2
        %s379 = scalar_lea.vmem [#allocation9], %s378
        %s380 = smul.u32 2, %s30
        %s381 = smul.u32 2, %s30
        %s382 = smul.u32 2, %s30
        %v384 = vlaneseq
        %v385 = vshrl.u32 %v384, 7
        %v386 = vadd.s32 %v385, 8
        %v387 = vadd.s32 %v385, 16
        %v388 = vadd.s32 %v385, 24
        %v389 = vadd.s32 %v385, 32
        %v390 = vadd.s32 %v385, 40
        %v391 = vadd.s32 %v385, 48
        %v392 = vadd.s32 %v385, 56
        %v393 = vld [vmem:[%s326] sm:$0x3]
        %v394 = vperm.slane %v393, 0
        %v395 = vperm.slane %v393, 1
        %vm396 = vcmp.eq.s32.totalorder %v385, %v394
        %vm397 = vcmp.eq.s32.totalorder %v385, %v395
        %vm398 = vcmp.eq.s32.totalorder %v386, %v394
        %vm399 = vcmp.eq.s32.totalorder %v386, %v395
        %vm400 = vcmp.eq.s32.totalorder %v387, %v394
        %vm401 = vcmp.eq.s32.totalorder %v387, %v395
        %vm402 = vcmp.eq.s32.totalorder %v388, %v394
        %vm403 = vcmp.eq.s32.totalorder %v388, %v395
        %vm404 = vcmp.eq.s32.totalorder %v389, %v394
        %vm405 = vcmp.eq.s32.totalorder %v389, %v395
        %vm406 = vcmp.eq.s32.totalorder %v390, %v394
        %vm407 = vcmp.eq.s32.totalorder %v390, %v395
        %vm408 = vcmp.eq.s32.totalorder %v391, %v394
        %vm409 = vcmp.eq.s32.totalorder %v391, %v395
        %vm410 = vcmp.eq.s32.totalorder %v392, %v394
        %vm411 = vcmp.eq.s32.totalorder %v392, %v395
        %v412 = vsel %vm396, 1.0, 0.0
        %v413 = vsel %vm397, 1.0, 0.0
        %v414 = vsel %vm398, 1.0, 0.0
        %v415 = vsel %vm399, 1.0, 0.0
        %v416 = vsel %vm400, 1.0, 0.0
        %v417 = vsel %vm401, 1.0, 0.0
        %v418 = vsel %vm402, 1.0, 0.0
        %v419 = vsel %vm403, 1.0, 0.0
        %v420 = vsel %vm404, 1.0, 0.0
        %v421 = vsel %vm405, 1.0, 0.0
        %v422 = vsel %vm406, 1.0, 0.0
        %v423 = vsel %vm407, 1.0, 0.0
        %v424 = vsel %vm408, 1.0, 0.0
        %v425 = vsel %vm409, 1.0, 0.0
        %v426 = vsel %vm410, 1.0, 0.0
        %v427 = vsel %vm411, 1.0, 0.0
        %v428 = vpack.c.bf16 %v414, %v412
        %v429 = vpack.c.bf16 %v415, %v413
        %v430 = vpack.c.bf16 %v418, %v416
        %v431 = vpack.c.bf16 %v419, %v417
        %v432 = vpack.c.bf16 %v422, %v420
        %v433 = vpack.c.bf16 %v423, %v421
        %v434 = vpack.c.bf16 %v426, %v424
        %v435 = vpack.c.bf16 %v427, %v425
        %v436 = vld [vmem:[%s336] sm:$0x3]
        %v437 = vperm.slane %v436, 0
        %v438 = vperm.slane %v436, 1
        %vm439 = vcmp.eq.s32.totalorder %v385, %v437
        %vm440 = vcmp.eq.s32.totalorder %v385, %v438
        %vm441 = vcmp.eq.s32.totalorder %v386, %v437
        %vm442 = vcmp.eq.s32.totalorder %v386, %v438
        %vm443 = vcmp.eq.s32.totalorder %v387, %v437
        %vm444 = vcmp.eq.s32.totalorder %v387, %v438
        %vm445 = vcmp.eq.s32.totalorder %v388, %v437
        %vm446 = vcmp.eq.s32.totalorder %v388, %v438
        %vm447 = vcmp.eq.s32.totalorder %v389, %v437
        %vm448 = vcmp.eq.s32.totalorder %v389, %v438
        %vm449 = vcmp.eq.s32.totalorder %v390, %v437
        %vm450 = vcmp.eq.s32.totalorder %v390, %v438
        %vm451 = vcmp.eq.s32.totalorder %v391, %v437
        %vm452 = vcmp.eq.s32.totalorder %v391, %v438
        %vm453 = vcmp.eq.s32.totalorder %v392, %v437
        %vm454 = vcmp.eq.s32.totalorder %v392, %v438
        %v455 = vsel %vm439, 1.0, 0.0
        %v456 = vsel %vm440, 1.0, 0.0
        %v457 = vsel %vm441, 1.0, 0.0
        %v458 = vsel %vm442, 1.0, 0.0
        %v459 = vsel %vm443, 1.0, 0.0
        %v460 = vsel %vm444, 1.0, 0.0
        %v461 = vsel %vm445, 1.0, 0.0
        %v462 = vsel %vm446, 1.0, 0.0
        %v463 = vsel %vm447, 1.0, 0.0
        %v464 = vsel %vm448, 1.0, 0.0
        %v465 = vsel %vm449, 1.0, 0.0
        %v466 = vsel %vm450, 1.0, 0.0
        %v467 = vsel %vm451, 1.0, 0.0
        %v468 = vsel %vm452, 1.0, 0.0
        %v469 = vsel %vm453, 1.0, 0.0
        %v470 = vsel %vm454, 1.0, 0.0
        %v471 = vpack.c.bf16 %v457, %v455
        %v472 = vpack.c.bf16 %v458, %v456
        %v473 = vpack.c.bf16 %v461, %v459
        %v474 = vpack.c.bf16 %v462, %v460
        %v475 = vpack.c.bf16 %v465, %v463
        %v476 = vpack.c.bf16 %v466, %v464
        %v477 = vpack.c.bf16 %v469, %v467
        %v478 = vpack.c.bf16 %v470, %v468
        %v479 = vld [vmem:[%s2] sm:$0xf]
        %v480 = vld [vmem:[%s2 + $0x4] sm:$0xf]
        %v481 = vld [vmem:[%s2 + $0x8] sm:$0xf]
        %v482 = vld [vmem:[%s2 + $0xc] sm:$0xf]
        %v487 = vunpack.c.l.b16 %v479
        %v488 = vunpack.c.l.b16 %v480
        %v489 = vunpack.c.l.b16 %v481
        %v490 = vunpack.c.l.b16 %v482
        %v491 = vpack.c.b16 %v488, %v487
        %v492 = vpack.c.b16 %v490, %v489
        %vm493 = vcmask 523264
        %v495 = vsel %vm493, %v491, 0
        %v498 = vsel %vm493, %v492, 0
        %500 = vmatpush.bf16.msra.mxu0 0
        %501 = vmatpush.bf16.msra.mxu0 0
        %502 = vmatpush.bf16.msra.mxu0 0
        %503 = vmatpush.bf16.msra.mxu0 0
        %504 = vmatpush.bf16.msra.mxu0 %v434
        %505 = vmatpush.bf16.msra.mxu0 %v432
        %506 = vmatpush.bf16.msra.mxu0 %v430
        %507 = vmatpush.bf16.msra.mxu0 %v428
        %508 = vmatmul.bf16.gmra.mxu0 %v495
        %v509 = vpop.f32.mrf.mxu0
        %v510 = vadd.f32 0.0, %v509
        %v511 = vpop.f32.mrf.mxu0
        %v512 = vadd.f32 0.0, %v511
        %513 = vmatmul.bf16.gmra.mxu0 %v498
        %v514 = vpop.f32.mrf.mxu0
        %v515 = vadd.f32 0.0, %v514
        %v516 = vpop.f32.mrf.mxu0
        %v517 = vadd.f32 0.0, %v516
        %518 = vdwg.mxu0
        %519 = vmatpush.bf16.msra.mxu0 0
        %520 = vmatpush.bf16.msra.mxu0 0
        %521 = vmatpush.bf16.msra.mxu0 0
        %522 = vmatpush.bf16.msra.mxu0 0
        %523 = vmatpush.bf16.msra.mxu0 %v435
        %524 = vmatpush.bf16.msra.mxu0 %v433
        %525 = vmatpush.bf16.msra.mxu0 %v431
        %526 = vmatpush.bf16.msra.mxu0 %v429
        %527 = vmatmul.bf16.gmra.mxu0 %v495
        %v528 = vpop.f32.mrf.mxu0
        %v529 = vadd.f32 0.0, %v528
        %v530 = vpop.f32.mrf.mxu0
        %v531 = vadd.f32 0.0, %v530
        %532 = vmatmul.bf16.gmra.mxu0 %v498
        %v533 = vpop.f32.mrf.mxu0
        %v534 = vadd.f32 0.0, %v533
        %v535 = vpop.f32.mrf.mxu0
        %v536 = vadd.f32 0.0, %v535
        %537 = vdwg.mxu0
        %538 = vmatpush.bf16.msra.mxu0 0
        %539 = vmatpush.bf16.msra.mxu0 0
        %540 = vmatpush.bf16.msra.mxu0 0
        %541 = vmatpush.bf16.msra.mxu0 0
        %542 = vmatpush.bf16.msra.mxu0 %v477
        %543 = vmatpush.bf16.msra.mxu0 %v475
        %544 = vmatpush.bf16.msra.mxu0 %v473
        %545 = vmatpush.bf16.msra.mxu0 %v471
        %546 = vmatmul.bf16.gmra.mxu0 %v495
        %v547 = vpop.f32.mrf.mxu0
        %v548 = vadd.f32 0.0, %v547
        %v549 = vpop.f32.mrf.mxu0
        %v550 = vadd.f32 0.0, %v549
        %551 = vmatmul.bf16.gmra.mxu0 %v498
        %v552 = vpop.f32.mrf.mxu0
        %v553 = vadd.f32 0.0, %v552
        %v554 = vpop.f32.mrf.mxu0
        %v555 = vadd.f32 0.0, %v554
        %556 = vdwg.mxu0
        %557 = vmatpush.bf16.msra.mxu0 0
        %558 = vmatpush.bf16.msra.mxu0 0
        %559 = vmatpush.bf16.msra.mxu0 0
        %560 = vmatpush.bf16.msra.mxu0 0
        %561 = vmatpush.bf16.msra.mxu0 %v478
        %562 = vmatpush.bf16.msra.mxu0 %v476
        %563 = vmatpush.bf16.msra.mxu0 %v474
        %564 = vmatpush.bf16.msra.mxu0 %v472
        %565 = vmatmul.bf16.gmra.mxu0 %v495
        %v566 = vpop.f32.mrf.mxu0
        %v567 = vadd.f32 0.0, %v566
        %v568 = vpop.f32.mrf.mxu0
        %v569 = vadd.f32 0.0, %v568
        %570 = vmatmul.bf16.gmra.mxu0 %v498
        %v571 = vpop.f32.mrf.mxu0
        %v572 = vadd.f32 0.0, %v571
        %v573 = vpop.f32.mrf.mxu0
        %v574 = vadd.f32 0.0, %v573
        %575 = vdwg.mxu0
        %v576 = vld [vmem:[%s3] sm:$0xf]
        %v577 = vld [vmem:[%s3 + $0x4] sm:$0xf]
        %v578 = vld [vmem:[%s3 + $0x8] sm:$0xf]
        %v579 = vld [vmem:[%s3 + $0xc] sm:$0xf]
        %v580 = vpack.c.bf16 %v512, %v510
        %v581 = vpack.c.bf16 %v531, %v529
        %v582 = vpack.c.bf16 %v517, %v515
        %v583 = vpack.c.bf16 %v536, %v534
        %v584 = vld [vmem:[#allocation8] sm:$0xf]
        %v585 = vld [vmem:[#allocation8 + $0x4] sm:$0xf]
        %v586 = vld [vmem:[#allocation8 + $0x8] sm:$0xf]
        %v587 = vld [vmem:[#allocation8 + $0xc] sm:$0xf]
        %v588 = vpack.c.bf16 %v550, %v548
        %v589 = vpack.c.bf16 %v569, %v567
        %v590 = vpack.c.bf16 %v555, %v553
        %v591 = vpack.c.bf16 %v574, %v572
        %v596 = vunpack.c.l.b16 %v584
        %v597 = vunpack.c.l.b16 %v585
        %v598 = vunpack.c.l.b16 %v586
        %v599 = vunpack.c.l.b16 %v587
        %v600 = vpack.c.b16 %v597, %v596
        %v601 = vpack.c.b16 %v599, %v598
        %vm602 = vcmask 261120
        %v604 = vsel %vm602, %v600, 0
        %v607 = vsel %vm602, %v601, 0
        %609 = vmatpush.bf16.msra.mxu0 0
        %610 = vmatpush.bf16.msra.mxu0 0
        %611 = vmatpush.bf16.msra.mxu0 0
        %612 = vmatpush.bf16.msra.mxu0 0
        %613 = vmatpush.bf16.msra.mxu0 0
        %614 = vmatpush.bf16.msra.mxu0 0
        %615 = vmatpush.bf16.msra.mxu0 %v590
        %616 = vmatpush.bf16.msra.mxu0 %v588
        %617 = vmatmul.bf16.gmra.mxu0 %v604
        %v618 = vpop.f32.mrf.mxu0
        %v619 = vadd.f32 0.0, %v618
        %v620 = vpop.f32.mrf.mxu0
        %v621 = vadd.f32 0.0, %v620
        %622 = vmatmul.bf16.gmra.mxu0 %v607
        %v623 = vpop.f32.mrf.mxu0
        %v624 = vadd.f32 0.0, %v623
        %v625 = vpop.f32.mrf.mxu0
        %v626 = vadd.f32 0.0, %v625
        %627 = vdwg.mxu0
        %628 = vmatpush.bf16.msra.mxu0 0
        %629 = vmatpush.bf16.msra.mxu0 0
        %630 = vmatpush.bf16.msra.mxu0 0
        %631 = vmatpush.bf16.msra.mxu0 0
        %632 = vmatpush.bf16.msra.mxu0 0
        %633 = vmatpush.bf16.msra.mxu0 0
        %634 = vmatpush.bf16.msra.mxu0 %v591
        %635 = vmatpush.bf16.msra.mxu0 %v589
        %636 = vmatmul.bf16.gmra.mxu0 %v604
        %v637 = vpop.f32.mrf.mxu0
        %v638 = vadd.f32 0.0, %v637
        %v639 = vpop.f32.mrf.mxu0
        %v640 = vadd.f32 0.0, %v639
        %641 = vmatmul.bf16.gmra.mxu0 %v607
        %v642 = vpop.f32.mrf.mxu0
        %v643 = vadd.f32 0.0, %v642
        %v644 = vpop.f32.mrf.mxu0
        %v645 = vadd.f32 0.0, %v644
        %646 = vdwg.mxu0
        %v651 = vunpack.c.l.b16 %v576
        %v652 = vunpack.c.l.b16 %v577
        %v653 = vunpack.c.l.b16 %v578
        %v654 = vunpack.c.l.b16 %v579
        %v655 = vpack.c.b16 %v652, %v651
        %v656 = vpack.c.b16 %v654, %v653
        %v658 = vsel %vm602, %v655, 0
        %v661 = vsel %vm602, %v656, 0
        %663 = vmatpush.bf16.msra.mxu0 0
        %664 = vmatpush.bf16.msra.mxu0 0
        %665 = vmatpush.bf16.msra.mxu0 0
        %666 = vmatpush.bf16.msra.mxu0 0
        %667 = vmatpush.bf16.msra.mxu0 0
        %668 = vmatpush.bf16.msra.mxu0 0
        %669 = vmatpush.bf16.msra.mxu0 %v582
        %670 = vmatpush.bf16.msra.mxu0 %v580
        %671 = vmatmul.bf16.gmra.mxu0 %v658
        %v672 = vpop.f32.mrf.mxu0
        %v673 = vadd.f32 %v619, %v672
        %v674 = vpop.f32.mrf.mxu0
        %v675 = vadd.f32 %v621, %v674
        %676 = vmatmul.bf16.gmra.mxu0 %v661
        %v677 = vpop.f32.mrf.mxu0
        %v678 = vadd.f32 %v624, %v677
        %v679 = vpop.f32.mrf.mxu0
        %v680 = vadd.f32 %v626, %v679
        %681 = vdwg.mxu0
        %682 = vmatpush.bf16.msra.mxu0 0
        %683 = vmatpush.bf16.msra.mxu0 0
        %684 = vmatpush.bf16.msra.mxu0 0
        %685 = vmatpush.bf16.msra.mxu0 0
        %686 = vmatpush.bf16.msra.mxu0 0
        %687 = vmatpush.bf16.msra.mxu0 0
        %688 = vmatpush.bf16.msra.mxu0 %v583
        %689 = vmatpush.bf16.msra.mxu0 %v581
        %690 = vmatmul.bf16.gmra.mxu0 %v658
        %v691 = vpop.f32.mrf.mxu0
        %v692 = vadd.f32 %v638, %v691
        %v693 = vpop.f32.mrf.mxu0
        %v694 = vadd.f32 %v640, %v693
        %695 = vmatmul.bf16.gmra.mxu0 %v661
        %v696 = vpop.f32.mrf.mxu0
        %v697 = vadd.f32 %v643, %v696
        %v698 = vpop.f32.mrf.mxu0
        %v699 = vadd.f32 %v645, %v698
        %700 = vdwg.mxu0
        %v701 = vld [vmem:[%s5] sm:$0xff]
        %v702 = vld [vmem:[%s5 + $0x8] sm:$0xff]
        %v703 = vld [vmem:[%s5 + $0x10] sm:$0xff]
        %v704 = vld [vmem:[%s5 + $0x18] sm:$0xff]
        %706 = vset.pattern.permute.xlu0 0
        %707 = vperm.xlu0 %706, %v701
        %v708 = vpop.permute.xlu0 %707
        %711 = vset.pattern.permute.xlu0 0
        %712 = vperm.xlu0 %711, %v702
        %v713 = vpop.permute.xlu0 %712
        %716 = vset.pattern.permute.xlu0 0
        %717 = vperm.xlu0 %716, %v703
        %v718 = vpop.permute.xlu0 %717
        %721 = vset.pattern.permute.xlu0 0
        %722 = vperm.xlu0 %721, %v704
        %v723 = vpop.permute.xlu0 %722
        %v725 = vadd.f32 %v673, %v708
        %v726 = vadd.f32 %v692, %v708
        %v727 = vadd.f32 %v675, %v713
        %v728 = vadd.f32 %v694, %v713
        %v729 = vadd.f32 %v678, %v718
        %v730 = vadd.f32 %v697, %v718
        %v731 = vadd.f32 %v680, %v723
        %v732 = vadd.f32 %v699, %v723
        %v733 = vmax.f32 %v725, 0.0
        %v734 = vmax.f32 %v726, 0.0
        %v735 = vmax.f32 %v727, 0.0
        %v736 = vmax.f32 %v728, 0.0
        %v737 = vmax.f32 %v729, 0.0
        %v738 = vmax.f32 %v730, 0.0
        %v739 = vmax.f32 %v731, 0.0
        %v740 = vmax.f32 %v732, 0.0
        %v741 = vld [vmem:[%s6] sm:$0x1]
        %v742 = vld [vmem:[#allocation2] sm:$0x1]
        %744 = vset.pattern.permute.xlu0 0
        %745 = vperm.xlu0 %744, %v742
        %v746 = vpop.permute.xlu0 %745
        %v748 = vperm.slane %v746, 0
        %v750 = vsel %vm602, %v741, 0
        %752 = vmatpush.msra.mxu0 0.0
        %753 = vmatpush.msra.mxu0 0.0
        %754 = vmatpush.msra.mxu0 0.0
        %755 = vmatpush.msra.mxu0 0.0
        %756 = vmatpush.msra.mxu0 0.0
        %757 = vmatpush.msra.mxu0 0.0
        %758 = vmatpush.msra.mxu0 0.0
        %759 = vmatpush.msra.mxu0 0.0
        %760 = vmatpush.msra.mxu0 0.0
        %761 = vmatpush.msra.mxu0 0.0
        %762 = vmatpush.msra.mxu0 0.0
        %763 = vmatpush.msra.mxu0 0.0
        %764 = vmatpush.msra.mxu0 %v739
        %765 = vmatpush.msra.mxu0 %v737
        %766 = vmatpush.msra.mxu0 %v735
        %767 = vmatpush.msra.mxu0 %v733
        %768 = vmatmul.f32.gmra.mxu0 %v750
        %v769 = vpop.f32.mrf.mxu0
        %v770 = vadd.f32 %v748, %v769
        %771 = vdwg.mxu0
        %772 = vmatpush.msra.mxu0 0.0
        %773 = vmatpush.msra.mxu0 0.0
        %774 = vmatpush.msra.mxu0 0.0
        %775 = vmatpush.msra.mxu0 0.0
        %776 = vmatpush.msra.mxu0 0.0
        %777 = vmatpush.msra.mxu0 0.0
        %778 = vmatpush.msra.mxu0 0.0
        %779 = vmatpush.msra.mxu0 0.0
        %780 = vmatpush.msra.mxu0 0.0
        %781 = vmatpush.msra.mxu0 0.0
        %782 = vmatpush.msra.mxu0 0.0
        %783 = vmatpush.msra.mxu0 0.0
        %784 = vmatpush.msra.mxu0 %v740
        %785 = vmatpush.msra.mxu0 %v738
        %786 = vmatpush.msra.mxu0 %v736
        %787 = vmatpush.msra.mxu0 %v734
        %788 = vmatmul.f32.gmra.mxu0 %v750
        %v789 = vpop.f32.mrf.mxu0
        %v790 = vadd.f32 %v748, %v789
        %791 = vdwg.mxu0
        %v794 = vrot.slane %v790, 7
        %vm795 = vcmask 1040384
        %v796 = vsel %vm795, %v770, %v794
        %v798 = vlaneseq
        %vm799 = vcmp.ge.s32.totalorder %v798, 0
        %vm800 = vcmp.lt.s32.totalorder %v798, 256
        %vm801 = vmand %vm799, %vm800
        %802 = vst.msk [vmem:[%s379] sm:$0x3] %vm801, %v796
        %s803 = sand.u32 %s216, 1
        %s804 = scalar_lea.sflag [#allocation5], %s803
        %s805 = sand.u32 %s216, 1
        %s806 = smul.addr %s805, 2
        %s807 = scalar_lea.vmem [#allocation9], %s806
        // Predicated region
        $region65: #{tpu_custom_call.1} parent=51 // pred_check
          %p808 = pneg %p226
        $region66: #{tpu_custom_call.1} parent=51 // pred_check_branch
          %810 = sbr.rel (%p808) target = $region68
        $region67: #{tpu_custom_call.1} parent=51 // pred_region
          %s811 = smul.u32 2, %s30
          %813 = vsyncadd %s804, 0
          %s814 = scalar_lea.hbm %s8, %s811
          %s816 = sshll.u32 %s807, 4
          %s817 = int_to_ptr.vmem [resolvable:$true] %s816
          %s818 = sshll.u32 %s814, 4
          %s819 = int_to_ptr.hbm [resolvable:$true] %s818
          %821 = dma.vmem_to_hbm [thread:$0]  %s817, 32, %s819, %s804
        $region68: #{tpu_custom_call.1} parent=51 // pred_fallthru
          _
      $region52: #{tpu_custom_call.1} parent=5 // pred_fallthru
        _
      %p822 = scmp.le.s32.totalorder 2, %s25
      // Predicated region
      $region69: #{tpu_custom_call.1} parent=5 // pred_check
        %p823 = pneg %p822
      $region70: #{tpu_custom_call.1} parent=5 // pred_check_branch
        %825 = sbr.rel (%p823) target = $region72
      $region71: #{tpu_custom_call.1} parent=5 // pred_region
        %s826 = ssub.s32 %s25, 2
        // Predicated region
        $region73: #{tpu_custom_call.1} parent=71 // pred_check
          %p827 = pneg %p232
        $region74: #{tpu_custom_call.1} parent=71 // pred_check_branch
          %829 = sbr.rel (%p827) target = $region76
        $region75: #{tpu_custom_call.1} parent=71 // pred_region
          %s830 = sand.u32 %s217, 1
          %s831 = scalar_lea.sflag [#allocation5], %s830
          %s832 = sand.u32 %s217, 1
          %s833 = smul.addr %s832, 2
          %s834 = scalar_lea.vmem [#allocation9], %s833
          %836 = dma.done %s831, 32
        $region76: #{tpu_custom_call.1} parent=71 // pred_fallthru
          _
      $region72: #{tpu_custom_call.1} parent=5 // pred_fallthru
        _
    $region6: #{tpu_custom_call.1} parent=1 // loop_footer
      %s29 = sadd.s32 1, %s25
    $region7: #{tpu_custom_call.1} parent=1 // loop_footer_branch
      %24 = sbr.rel target = $region3
    $region8: #{tpu_custom_call.1} parent=1 // loop_exit
      _
    %837 = vsyncpa [#allocation4], 1
    %s838 = scalar_lea.sflag [#allocation4], 1
    %839 = vsyncpa %s838, 1
    %840 = vsyncpa [#allocation7], 1
    %s841 = scalar_lea.sflag [#allocation7], 1
    %842 = vsyncpa %s841, 1
    %843 = vsyncpa [#allocation5], 1
    %s844 = scalar_lea.sflag [#allocation5], 1
    %845 = vsyncpa %s844, 1

</llo_original>
